<compile_context>
chip_gen: v5e
topology: v5e:2x2
jax: 0.10.0
libtpu: 0.0.40
codegen_flags: <defaults>
</compile_context>

<pallas_src>
import jax
import jax.numpy as jnp
from jax.experimental import pallas as pl
from jax.experimental.pallas import tpu as pltpu

SUBLANE = 8  # f32 vreg sublane count


def _round_up(n, m):
    return ((n + m - 1) // m) * m


def _cdiv(a, b):
    return (a + b - 1) // b


def classifier_kernel(x_ref, w1_ref, b1_ref, w2_ref, b2_ref, o_ref):
    # layer 1: bf16 MXU operands, f32 accumulation; bias-add + ReLU in f32
    h = jnp.dot(x_ref[...].astype(jnp.bfloat16), w1_ref[...],
                preferred_element_type=jnp.float32)
    h = jnp.maximum(h + b1_ref[...], 0.0)
    # layer 2: bf16 MXU operands, f32 accumulation; bias-add in f32
    out = jnp.dot(h.astype(jnp.bfloat16), w2_ref[...],
                  preferred_element_type=jnp.float32)
    out = out + b2_ref[...]
    o_ref[...] = out.astype(o_ref.dtype)


def classifier_forward(x, w1, b1, w2, b2, *, tile_b=None):
    """x: [B, in_dim]; w1: [in_dim, post_dim]; b1: [1, post_dim];
    w2: [post_dim, out_dim]; b2: [1, out_dim]."""
    B, in_dim = x.shape
    post_dim = w1.shape[1]
    out_dim = w2.shape[1]

    # Generation-aware default tile: kernel is HBM-bound, so use big batch tiles.
    try:
        kind = jax.devices()[0].device_kind.lower()
    except Exception:  # pragma: no cover - defensive
        kind = ""
    if tile_b is None:
        tile_b = 4096 if "v7" in kind else 2048

    # Number of grid steps, distributing rows evenly (sublane-aligned tiles).
    n_tiles = max(1, _cdiv(B, tile_b))
    # v7x has 2 TensorCores: make sure both get a tile when B is big enough.
    if "v7" in kind and n_tiles == 1 and B >= 2 * SUBLANE:
        n_tiles = 2

    if n_tiles == 1:
        # Single step: full-extent block (always satisfies the block rule),
        # no padding, no masking.
        tile_rows = B
    else:
        tile_rows = _round_up(_cdiv(B, n_tiles), SUBLANE)
    grid = (_cdiv(B, tile_rows),)

    # Weights/biases are tiny and DMA'd once; pre-cast weights to bf16 here
    # (not per grid step inside the kernel).
    w1b = w1.astype(jnp.bfloat16)
    w2b = w2.astype(jnp.bfloat16)

    flops = 2 * B * (in_dim * post_dim + post_dim * out_dim)
    bytes_accessed = (x.size * x.dtype.itemsize
                      + w1b.size * w1b.dtype.itemsize
                      + b1.size * b1.dtype.itemsize
                      + w2b.size * w2b.dtype.itemsize
                      + b2.size * b2.dtype.itemsize
                      + B * out_dim * x.dtype.itemsize)

    out = pl.pallas_call(
        classifier_kernel,
        out_shape=jax.ShapeDtypeStruct((B, out_dim), x.dtype),
        grid=grid,
        in_specs=[
            # batch-tiled input: one (tile_rows, in_dim) block per grid step
            # (last dim = full array dim -> no K padding needed).
            pl.BlockSpec((tile_rows, in_dim), lambda i: (i, 0)),
            # weights / biases: constant block index -> DMA'd once, VMEM-resident.
            pl.BlockSpec((in_dim, post_dim), lambda i: (0, 0)),
            pl.BlockSpec((1, post_dim), lambda i: (0, 0)),
            pl.BlockSpec((post_dim, out_dim), lambda i: (0, 0)),
            pl.BlockSpec((1, out_dim), lambda i: (0, 0)),
        ],
        # output emitted directly at (B, out_dim): no 128-lane padding, no
        # trailing slice copy. Boundary tile writes are masked by Pallas.
        out_specs=pl.BlockSpec((tile_rows, out_dim), lambda i: (i, 0)),
        compiler_params=pltpu.CompilerParams(
            dimension_semantics=("parallel",)),
        cost_estimate=pl.CostEstimate(flops=flops,
                                      bytes_accessed=bytes_accessed,
                                      transcendentals=0),
    )(x, w1b, b1, w2b, b2)

    return out


def xavier_normal(key, fan_in, fan_out, dtype=jnp.float32):
    # matches torch.nn.init.xavier_normal_: std = sqrt(2 / (fan_in + fan_out))
    std = (2.0 / (fan_in + fan_out)) ** 0.5
    return std * jax.random.normal(key, (fan_in, fan_out), dtype=dtype)


if __name__ == "__main__":
    # small shapes consistent with the module: batch=8, in_dim=32, post_dim=64, out_dim=8
    B, in_dim, post_dim, out_dim = 8, 32, 64, 8

    key = jax.random.PRNGKey(0)
    kx, k1, k2 = jax.random.split(key, 3)

    x = jax.random.normal(kx, (B, in_dim), dtype=jnp.float32)

    # deterministic parameter init (xavier normal weights, zero biases)
    w1 = xavier_normal(k1, in_dim, post_dim)   # [in_dim, post_dim] (pre-transposed)
    b1 = jnp.zeros((1, post_dim), dtype=jnp.float32)
    w2 = xavier_normal(k2, post_dim, out_dim)  # [post_dim, out_dim]
    b2 = jnp.zeros((1, out_dim), dtype=jnp.float32)

    out = classifier_forward(x, w1, b1, w2, b2)
    jax.block_until_ready(out)
    assert out.shape == (B, out_dim)

    # reference with the same bf16-operand / f32-accumulate numerics
    w1_bf = w1.astype(jnp.bfloat16)
    w2_bf = w2.astype(jnp.bfloat16)
    ref_h = jnp.maximum(
        jnp.dot(x.astype(jnp.bfloat16), w1_bf, preferred_element_type=jnp.float32) + b1,
        0.0)
    ref_bf16 = jnp.dot(ref_h.astype(jnp.bfloat16), w2_bf,
                       preferred_element_type=jnp.float32) + b2
    assert jnp.allclose(out, ref_bf16, atol=1e-3, rtol=1e-3)

    # looser sanity check against the pure-f32 reference
    # (bf16 MXU operands deviate from a pure-f32 PyTorch Classifier by ~1e-2 rel.)
    ref_f32 = jnp.maximum(x @ w1 + b1, 0.0) @ w2 + b2
    assert jnp.allclose(out, ref_f32, atol=3e-2, rtol=3e-2)

    print("KERNEL_OK")
</pallas_src>

<mosaic_0001>
module attributes {stable_mosaic.version = 11 : i64} {
  func.func @classifier_kernel(%arg0: i32, %arg1: memref<8x32xf32, #tpu.memory_space<vmem>>, %arg2: memref<32x64xbf16, #tpu.memory_space<vmem>>, %arg3: memref<1x64xf32, #tpu.memory_space<vmem>>, %arg4: memref<64x8xbf16, #tpu.memory_space<vmem>>, %arg5: memref<1x8xf32, #tpu.memory_space<vmem>>, %arg6: memref<8x8xf32, #tpu.memory_space<vmem>>) attributes {dimension_semantics = [#tpu.dimension_semantics<parallel>], iteration_bounds = array<i64: 1>, scalar_prefetch = 0 : i64, scratch_operands = 0 : i64, tpu.core_type = #tpu.core_type<tc>, window_params = [{transform_indices = @transform_0, window_bounds = array<i64: 8, 32>}, {pipeline_mode = #tpu.pipeline_mode<synchronous>, transform_indices = @transform_1, window_bounds = array<i64: 32, 64>}, {pipeline_mode = #tpu.pipeline_mode<synchronous>, transform_indices = @transform_2, window_bounds = array<i64: 1, 64>}, {pipeline_mode = #tpu.pipeline_mode<synchronous>, transform_indices = @transform_3, window_bounds = array<i64: 64, 8>}, {pipeline_mode = #tpu.pipeline_mode<synchronous>, transform_indices = @transform_4, window_bounds = array<i64: 1, 8>}, {transform_indices = @transform_5, window_bounds = array<i64: 8, 8>}]} {
    %c0 = arith.constant 0 : index
    %c0_0 = arith.constant 0 : index
    %0 = vector.load %arg1[%c0, %c0_0] : memref<8x32xf32, #tpu.memory_space<vmem>>, vector<8x32xf32>
    %1 = arith.truncf %0 : vector<8x32xf32> to vector<8x32xbf16>
    %c0_1 = arith.constant 0 : index
    %c0_2 = arith.constant 0 : index
    %2 = vector.load %arg2[%c0_1, %c0_2] : memref<32x64xbf16, #tpu.memory_space<vmem>>, vector<32x64xbf16>
    %cst = arith.constant dense<0.000000e+00> : vector<8x64xf32>
    %3 = tpu.matmul %1, %2, %cst {dimension_numbers = #tpu.dot_dimension_numbers<[1], [0], [0], [1], [0, 0, 1, 1], [], []>} : vector<8x32xbf16>, vector<32x64xbf16>, vector<8x64xf32> -> vector<8x64xf32>
    %c0_3 = arith.constant 0 : index
    %c0_4 = arith.constant 0 : index
    %4 = vector.load %arg3[%c0_3, %c0_4] : memref<1x64xf32, #tpu.memory_space<vmem>>, vector<1x64xf32>
    %5 = vector.broadcast %4 : vector<1x64xf32> to vector<8x64xf32>
    %6 = arith.addf %3, %5 : vector<8x64xf32>
    %cst_5 = arith.constant 0.000000e+00 : f32
    %7 = vector.broadcast %cst_5 : f32 to vector<8x64xf32>
    %8 = arith.maximumf %6, %7 : vector<8x64xf32>
    %9 = arith.truncf %8 : vector<8x64xf32> to vector<8x64xbf16>
    %c0_6 = arith.constant 0 : index
    %c0_7 = arith.constant 0 : index
    %10 = vector.load %arg4[%c0_6, %c0_7] : memref<64x8xbf16, #tpu.memory_space<vmem>>, vector<64x8xbf16>
    %cst_8 = arith.constant dense<0.000000e+00> : vector<8x8xf32>
    %11 = tpu.matmul %9, %10, %cst_8 {dimension_numbers = #tpu.dot_dimension_numbers<[1], [0], [0], [1], [0, 0, 1, 1], [], []>} : vector<8x64xbf16>, vector<64x8xbf16>, vector<8x8xf32> -> vector<8x8xf32>
    %c0_9 = arith.constant 0 : index
    %c0_10 = arith.constant 0 : index
    %12 = vector.load %arg5[%c0_9, %c0_10] : memref<1x8xf32, #tpu.memory_space<vmem>>, vector<1x8xf32>
    %13 = vector.broadcast %12 : vector<1x8xf32> to vector<8x8xf32>
    %14 = arith.addf %11, %13 : vector<8x8xf32>
    %c0_11 = arith.constant 0 : index
    %c0_12 = arith.constant 0 : index
    %15 = vector.load %arg6[%c0_11, %c0_12] : memref<8x8xf32, #tpu.memory_space<vmem>>, vector<8x8xf32>
    tpu.vector_store %arg6[%c0_11, %c0_12], %14 {strides = array<i32>} : memref<8x8xf32, #tpu.memory_space<vmem>>, vector<8x8xf32>,
    return
  }
  func.func @transform_0(%arg0: i32) -> (i32, i32) {
    %c0_i32 = arith.constant 0 : i32
    %c0_i32_0 = arith.constant 0 : i32
    return %arg0, %c0_i32 : i32, i32
  }
  func.func @transform_1(%arg0: i32) -> (i32, i32) {
    %c0_i32 = arith.constant 0 : i32
    %c0_i32_0 = arith.constant 0 : i32
    %c0_i32_1 = arith.constant 0 : i32
    return %c0_i32, %c0_i32_0 : i32, i32
  }
  func.func @transform_2(%arg0: i32) -> (i32, i32) {
    %c0_i32 = arith.constant 0 : i32
    %c0_i32_0 = arith.constant 0 : i32
    %c0_i32_1 = arith.constant 0 : i32
    return %c0_i32, %c0_i32_0 : i32, i32
  }
  func.func @transform_3(%arg0: i32) -> (i32, i32) {
    %c0_i32 = arith.constant 0 : i32
    %c0_i32_0 = arith.constant 0 : i32
    %c0_i32_1 = arith.constant 0 : i32
    return %c0_i32, %c0_i32_0 : i32, i32
  }
  func.func @transform_4(%arg0: i32) -> (i32, i32) {
    %c0_i32 = arith.constant 0 : i32
    %c0_i32_0 = arith.constant 0 : i32
    %c0_i32_1 = arith.constant 0 : i32
    return %c0_i32, %c0_i32_0 : i32, i32
  }
  func.func @transform_5(%arg0: i32) -> (i32, i32) {
    %c0_i32 = arith.constant 0 : i32
    %c0_i32_0 = arith.constant 0 : i32
    return %arg0, %c0_i32 : i32, i32
  }
}

</mosaic_0001>

<llo_original>
// kernel: tpu_custom_call.1
$region0: #{tpu_custom_call.1}
  #allocation0 [shape = 'u32[]', space=smem, size = 0x4, offset = 0x4, fixed_abs, tag = 'smem constant byte address 0x4 - core index']
  #allocation1 [shape = 'u32[72,128]{1,0:T(1,128)}', space=vmem, size = 0x9000, scoped, tag = 'internal scratch']
  %s0 = inlined_call_operand.vmem [shape: f32[8,32], index: 0, kind: input, shape index: {}]
  %s1 = inlined_call_operand.vmem [shape: bf16[32,64], index: 1, kind: input, shape index: {}]
  %s2 = inlined_call_operand.vmem [shape: f32[1,64], index: 2, kind: input, shape index: {}]
  %s3 = inlined_call_operand.vmem [shape: bf16[64,8], index: 3, kind: input, shape index: {}]
  %s4 = inlined_call_operand.vmem [shape: f32[1,8], index: 4, kind: input, shape index: {}]
  %s5 = inlined_call_operand.hbm [shape: f32[8,8], index: 5, kind: output, shape index: {}]
  %s6 = sld [smem:[#allocation0]]
  $region30: #{tpu_custom_call.1} parent=0
    _
  %s8 = ssub.s32 1, %s6
  %s9 = scalar_select 0, %s8, %s6
  $region1: #{tpu_custom_call.1} parent=0
    #allocation2 [shape = 'u8[4096]{0}', space=vmem, size = 0x1000, scoped, tag = 'output window, operand 0, single buffered']
    #allocation3 [shape = 's32[1]{0}', space=sflag, size = 0x4, scoped, tag = 'scoped memory for tpu_custom_call.1']
    %10 = vsyncpa [#allocation3], 0
    // Predicated region
    $region2: #{tpu_custom_call.1} parent=1 // pred_check
      _
    $region3: #{tpu_custom_call.1} parent=1 // pred_check_branch
      %12 = sbr.rel (0) target = $region5
    $region4: #{tpu_custom_call.1} parent=1 // pred_region
      _
    $region5: #{tpu_custom_call.1} parent=1 // pred_fallthru
      _
    // Predicated region
    $region6: #{tpu_custom_call.1} parent=1 // pred_check
      _
    $region7: #{tpu_custom_call.1} parent=1 // pred_check_branch
      %14 = sbr.rel (0) target = $region9
    $region8: #{tpu_custom_call.1} parent=1 // pred_region
      _
    $region9: #{tpu_custom_call.1} parent=1 // pred_fallthru
      _
    // Predicated region
    $region10: #{tpu_custom_call.1} parent=1 // pred_check
      _
    $region11: #{tpu_custom_call.1} parent=1 // pred_check_branch
      %16 = sbr.rel (0) target = $region13
    $region12: #{tpu_custom_call.1} parent=1 // pred_region
      _
    $region13: #{tpu_custom_call.1} parent=1 // pred_fallthru
      _
    // Predicated region
    $region14: #{tpu_custom_call.1} parent=1 // pred_check
      _
    $region15: #{tpu_custom_call.1} parent=1 // pred_check_branch
      %18 = sbr.rel (0) target = $region17
    $region16: #{tpu_custom_call.1} parent=1 // pred_region
      _
    $region17: #{tpu_custom_call.1} parent=1 // pred_fallthru
      _
    // Predicated region
    $region18: #{tpu_custom_call.1} parent=1 // pred_check
      _
    $region19: #{tpu_custom_call.1} parent=1 // pred_check_branch
      %20 = sbr.rel (0) target = $region21
    $region20: #{tpu_custom_call.1} parent=1 // pred_region
      _
    $region21: #{tpu_custom_call.1} parent=1 // pred_fallthru
      _
    %v22 = vld [vmem:[%s0] sm:$0xff]
    %v23 = vpack.c.bf16 %v22, %v22
    %v24 = vld [vmem:[%s1] sm:$0xf]
    %v25 = vld [vmem:[%s1 + $0x4] sm:$0xf]
    %v26 = vld [vmem:[%s1 + $0x8] sm:$0xf]
    %v27 = vld [vmem:[%s1 + $0xc] sm:$0xf]
    %v28 = vld [vmem:[%s2] sm:$0x1]
    %v30 = vperm.slane %v28, 0
    %v36 = vunpack.c.l.b16 %v24
    %v37 = vunpack.c.l.b16 %v25
    %v38 = vunpack.c.l.b16 %v26
    %v39 = vunpack.c.l.b16 %v27
    %v40 = vpack.c.b16 %v37, %v36
    %v41 = vpack.c.b16 %v39, %v38
    %vm44 = vcmask 261120
    %v46 = vsel %vm44, %v23, 0
    %48 = vmatpush.bf16.msra.mxu0 0
    %49 = vmatpush.bf16.msra.mxu0 0
    %50 = vmatpush.bf16.msra.mxu0 0
    %51 = vmatpush.bf16.msra.mxu0 0
    %52 = vmatpush.bf16.msra.mxu0 0
    %53 = vmatpush.bf16.msra.mxu0 0
    %54 = vmatpush.bf16.msra.mxu0 %v41
    %55 = vmatpush.bf16.msra.mxu0 %v40
    %56 = vmatmul.bf16.gmra.mxu0 %v46
    %v57 = vpop.f32.mrf.mxu0
    %v58 = vadd.f32 %v30, %v57
    %v59 = vpop.f32.mrf.mxu0
    %60 = vdwg.mxu0
    %v61 = vmax.f32 %v58, 0.0
    %v62 = vpack.c.bf16 %v61, %v61
    %v63 = vld [vmem:[%s3] sm:$0xf]
    %v64 = vld [vmem:[%s3 + $0x4] sm:$0xf]
    %v65 = vld [vmem:[%s3 + $0x8] sm:$0xf]
    %v66 = vld [vmem:[%s3 + $0xc] sm:$0xf]
    %v67 = vld [vmem:[%s3 + $0x10] sm:$0xf]
    %v68 = vld [vmem:[%s3 + $0x14] sm:$0xf]
    %v69 = vld [vmem:[%s3 + $0x18] sm:$0xf]
    %v70 = vld [vmem:[%s3 + $0x1c] sm:$0xf]
    %v71 = vld [vmem:[%s4] sm:$0x1]
    %v73 = vperm.slane %v71, 0
    %v83 = vunpack.c.l.b16 %v63
    %v84 = vunpack.c.l.b16 %v64
    %v85 = vunpack.c.l.b16 %v65
    %v86 = vunpack.c.l.b16 %v66
    %v87 = vunpack.c.l.b16 %v67
    %v88 = vunpack.c.l.b16 %v68
    %v89 = vunpack.c.l.b16 %v69
    %v90 = vunpack.c.l.b16 %v70
    %v91 = vpack.c.b16 %v84, %v83
    %v92 = vpack.c.b16 %v86, %v85
    %v93 = vpack.c.b16 %v88, %v87
    %v94 = vpack.c.b16 %v90, %v89
    %vm99 = vcmask 523264
    %v101 = vsel %vm99, %v62, 0
    %103 = vmatpush.bf16.msra.mxu0 0
    %104 = vmatpush.bf16.msra.mxu0 0
    %105 = vmatpush.bf16.msra.mxu0 0
    %106 = vmatpush.bf16.msra.mxu0 0
    %107 = vmatpush.bf16.msra.mxu0 %v94
    %108 = vmatpush.bf16.msra.mxu0 %v93
    %109 = vmatpush.bf16.msra.mxu0 %v92
    %110 = vmatpush.bf16.msra.mxu0 %v91
    %111 = vmatmul.bf16.gmra.mxu0 %v101
    %v112 = vpop.f32.mrf.mxu0
    %v113 = vadd.f32 %v73, %v112
    %v114 = vpop.f32.mrf.mxu0
    %115 = vdwg.mxu0
    %vm116 = vcmask 64512
    %117 = vst.msk [vmem:[#allocation2] sm:$0xff] %vm116, %v113
    // Predicated region
    $region22: #{tpu_custom_call.1} parent=1 // pred_check
      _
    $region23: #{tpu_custom_call.1} parent=1 // pred_check_branch
      %119 = sbr.rel (0) target = $region25
    $region24: #{tpu_custom_call.1} parent=1 // pred_region
      %121 = vsyncadd [#allocation3], 0
      %s123 = sshll.u32 [#allocation2], 4
      %s124 = int_to_ptr.vmem [resolvable:$true] %s123
      %s125 = sshll.u32 %s5, 4
      %s126 = int_to_ptr.hbm [resolvable:$true] %s125
      %128 = dma.vmem_to_hbm [thread:$0]  %s124, 128, %s126, [#allocation3]
    $region25: #{tpu_custom_call.1} parent=1 // pred_fallthru
      _
    // Predicated region
    $region26: #{tpu_custom_call.1} parent=1 // pred_check
      _
    $region27: #{tpu_custom_call.1} parent=1 // pred_check_branch
      %130 = sbr.rel (0) target = $region29
    $region28: #{tpu_custom_call.1} parent=1 // pred_region
      %132 = dma.done [#allocation3], 128
    $region29: #{tpu_custom_call.1} parent=1 // pred_fallthru
      _
    %133 = vsyncpa [#allocation3], 1

</llo_original>
